<compile_context>
chip_gen: v7x
topology: tpu7x:2x2x1
jax: 0.10.0
libtpu: 0.0.40
codegen_flags: <defaults>
</compile_context>

<pallas_src>
import functools

import jax
import jax.numpy as jnp
from jax.experimental import pallas as pl
from jax.experimental.pallas import tpu as pltpu


_VMEM_WORKING_SET_BUDGET = 16 * 1024 * 1024   # per-step in/out/scratch budget
_VMEM_LIMIT_BYTES = 32 * 1024 * 1024          # scoped-VMEM cap, safe v5e..v7x


def _maxpool_kernel(x_ref, o_ref, vbuf, *, kh, kw, sh, sw, h_out, w_out):
    # x_ref:  (B_blk, H, W, C_blk)          NHWC input tile (C on lanes)
    # o_ref:  (B_blk, h_out, w_out, C_blk)  pooled output tile
    # vbuf:   (B_blk, h_out, W, C_blk)      vertical-max intermediate (VMEM)

    # Pass 1 (vertical, first): kh stride-sh plane reads along H — cheap
    # addressing, contiguous along the sublane (W) axis.
    vmax = x_ref[:, pl.ds(0, h_out, sh), :, :]
    for i in range(1, kh):  # static, kh == 3
        vmax = jnp.maximum(vmax, x_ref[:, pl.ds(i, h_out, sh), :, :])
    vbuf[...] = vmax

    # Pass 2 (horizontal): kw stride-sw sublane reads on the *reduced*
    # (h_out-row) buffer — about half the strided-read volume of running the
    # horizontal pass at full H resolution.
    out = vbuf[:, :, pl.ds(0, w_out, sw), :]
    for j in range(1, kw):  # static, kw == 3
        out = jnp.maximum(out, vbuf[:, :, pl.ds(j, w_out, sw), :])
    o_ref[...] = out


def _pick_c_blk(c):
    """Lane-dense channel block: largest 128-multiple divisor of C (<= 1024
    lanes per block); otherwise the full channel count in a single block."""
    if c % 128 != 0:
        # TODO(synk): pad C to a 128 multiple at the graph level for fully
        # unmasked lane-dense stores (stem C=64/192, mixed C=288 cases).
        return c
    best = 128
    k = 256
    while k <= min(c, 1024):
        if c % k == 0:
            best = k
        k += 128
    return best


def _pick_b_blk(n, bytes_per_image, n_c_blocks):
    """Largest divisor of N whose per-step working set fits the VMEM budget,
    while keeping >= 2 grid steps (v7x dual-TC / pipelining) when possible."""
    best = 1
    for b in range(1, n + 1):
        if n % b == 0 and b * bytes_per_image <= _VMEM_WORKING_SET_BUDGET:
            best = b
    if best == n and n > 1 and n_c_blocks == 1:
        for b in range(n // 2, 0, -1):
            if n % b == 0:
                best = b
                break
    return best


def maxpool2d_3x3s2_nhwc(x_nhwc, *, kernel_size=3, stride=2, padding=0):
    """3x3 / stride-2 / pad-0 max pool, NHWC in -> NHWC out (Pallas kernel)."""
    # TODO(synk): only padding=0 (the module's setting) is implemented;
    # non-zero padding would need -inf border handling.
    assert padding == 0
    n, h, w, c = x_nhwc.shape
    kh = kw = kernel_size
    sh = sw = stride
    h_out = (h - kh) // sh + 1   # floor mode (PyTorch ceil_mode=False default)
    w_out = (w - kw) // sw + 1

    c_blk = _pick_c_blk(c)
    n_c_blocks = c // c_blk
    itemsize = jnp.dtype(x_nhwc.dtype).itemsize
    # 2x input + 2x output (double buffered) + vertical-max scratch, per image.
    bytes_per_image = itemsize * c_blk * (
        2 * h * w + 2 * h_out * w_out + h_out * w)
    b_blk = _pick_b_blk(n, bytes_per_image, n_c_blocks)
    grid = (n // b_blk, n_c_blocks)
    # TODO(synk): for N=1 inference with a single channel block (grid (1,1))
    # add an h_out tiling axis (1-row halo) so v7x's second TensorCore is used.

    kernel = functools.partial(
        _maxpool_kernel, kh=kh, kw=kw, sh=sh, sw=sw, h_out=h_out, w_out=w_out)

    return pl.pallas_call(
        kernel,
        out_shape=jax.ShapeDtypeStruct((n, h_out, w_out, c), x_nhwc.dtype),
        grid=grid,
        in_specs=[
            pl.BlockSpec((b_blk, h, w, c_blk), lambda b, cb: (b, 0, 0, cb)),
        ],
        out_specs=pl.BlockSpec(
            (b_blk, h_out, w_out, c_blk), lambda b, cb: (b, 0, 0, cb)),
        scratch_shapes=[pltpu.VMEM((b_blk, h_out, w, c_blk), x_nhwc.dtype)],
        compiler_params=pltpu.CompilerParams(
            dimension_semantics=("parallel", "parallel"),
            vmem_limit_bytes=_VMEM_LIMIT_BYTES),
    )(x_nhwc)


def maxpool_branch_pallas(x_nchw, *, kernel_size=3, stride=2, padding=0):
    """MaxPoolBranch.forward — PyTorch NCHW in / NCHW out (layout wrappers
    only; use maxpool2d_3x3s2_nhwc directly in an NHWC end-to-end model)."""
    x = jnp.transpose(x_nchw, (0, 2, 3, 1))          # NCHW -> NHWC
    y = maxpool2d_3x3s2_nhwc(
        x, kernel_size=kernel_size, stride=stride, padding=padding)
    return jnp.transpose(y, (0, 3, 1, 2))            # NHWC -> NCHW


def maxpool_branch_reference(x_nchw, *, kernel_size=3, stride=2):
    """Pure-JAX reference (lax.reduce_window) for validation."""
    x = jnp.transpose(x_nchw, (0, 2, 3, 1))
    y = jax.lax.reduce_window(
        x,
        -jnp.inf,
        jax.lax.max,
        window_dimensions=(1, kernel_size, kernel_size, 1),
        window_strides=(1, stride, stride, 1),
        padding="VALID",
    )
    return jnp.transpose(y, (0, 3, 1, 2))


if __name__ == "__main__":
    key = jax.random.PRNGKey(0)

    # Small NCHW test consistent with the module (batch=2, C=4, 16x16).
    x = jax.random.normal(key, (2, 4, 16, 16), jnp.float32)
    out = jax.block_until_ready(maxpool_branch_pallas(x))
    ref = maxpool_branch_reference(x)
    assert out.shape == ref.shape, (out.shape, ref.shape)
    assert jnp.allclose(out, ref, atol=1e-6, rtol=1e-6), float(
        jnp.max(jnp.abs(out - ref)))

    # Second small check exercising the lane-dense (C=128) and batch-blocked
    # path (B_blk > 1, grid kept >= 2 steps).
    x2 = jax.random.normal(jax.random.PRNGKey(0), (4, 128, 9, 9), jnp.float32)
    out2 = jax.block_until_ready(maxpool_branch_pallas(x2))
    ref2 = maxpool_branch_reference(x2)
    assert out2.shape == ref2.shape, (out2.shape, ref2.shape)
    assert jnp.allclose(out2, ref2, atol=1e-6, rtol=1e-6), float(
        jnp.max(jnp.abs(out2 - ref2)))

    print("KERNEL_OK")
</pallas_src>

<mosaic_0001>
module attributes {stable_mosaic.version = 11 : i64} {
  func.func @_maxpool_kernel(%arg0: i32, %arg1: i32, %arg2: memref<1x16x16x4xf32, #tpu.memory_space<vmem>>, %arg3: memref<1x7x7x4xf32, #tpu.memory_space<vmem>>, %arg4: memref<1x7x16x4xf32, #tpu.memory_space<vmem>>) attributes {dimension_semantics = [#tpu.dimension_semantics<parallel>, #tpu.dimension_semantics<parallel>], iteration_bounds = array<i64: 2, 1>, scalar_prefetch = 0 : i64, scratch_operands = 1 : i64, tpu.core_type = #tpu.core_type<tc>, window_params = [{transform_indices = @transform_0, window_bounds = array<i64: 1, 16, 16, 4>}, {transform_indices = @transform_1, window_bounds = array<i64: 1, 7, 7, 4>}]} {
    %c0 = arith.constant 0 : index
    %c0_0 = arith.constant 0 : index
    %c0_1 = arith.constant 0 : index
    %c0_2 = arith.constant 0 : index
    %0 = tpu.strided_load %arg2[%c0, %c0_0, %c0_1, %c0_2] {strides = array<i32: 1, 2, 1, 1>} : memref<1x16x16x4xf32, #tpu.memory_space<vmem>>, vector<1x7x16x4xf32>
    %c0_3 = arith.constant 0 : index
    %c1 = arith.constant 1 : index
    %c0_4 = arith.constant 0 : index
    %c0_5 = arith.constant 0 : index
    %1 = tpu.strided_load %arg2[%c0_3, %c1, %c0_4, %c0_5] {strides = array<i32: 1, 2, 1, 1>} : memref<1x16x16x4xf32, #tpu.memory_space<vmem>>, vector<1x7x16x4xf32>
    %2 = arith.maximumf %0, %1 : vector<1x7x16x4xf32>
    %c0_6 = arith.constant 0 : index
    %c2 = arith.constant 2 : index
    %c0_7 = arith.constant 0 : index
    %c0_8 = arith.constant 0 : index
    %3 = tpu.strided_load %arg2[%c0_6, %c2, %c0_7, %c0_8] {strides = array<i32: 1, 2, 1, 1>} : memref<1x16x16x4xf32, #tpu.memory_space<vmem>>, vector<1x7x16x4xf32>
    %4 = arith.maximumf %2, %3 : vector<1x7x16x4xf32>
    %c0_9 = arith.constant 0 : index
    %c0_10 = arith.constant 0 : index
    %c0_11 = arith.constant 0 : index
    %c0_12 = arith.constant 0 : index
    %5 = vector.load %arg4[%c0_9, %c0_10, %c0_11, %c0_12] : memref<1x7x16x4xf32, #tpu.memory_space<vmem>>, vector<1x7x16x4xf32>
    tpu.vector_store %arg4[%c0_9, %c0_10, %c0_11, %c0_12], %4 {strides = array<i32>} : memref<1x7x16x4xf32, #tpu.memory_space<vmem>>, vector<1x7x16x4xf32>,
    %c0_13 = arith.constant 0 : index
    %c0_14 = arith.constant 0 : index
    %c0_15 = arith.constant 0 : index
    %c0_16 = arith.constant 0 : index
    %6 = tpu.strided_load %arg4[%c0_13, %c0_14, %c0_15, %c0_16] {strides = array<i32: 1, 1, 2, 1>} : memref<1x7x16x4xf32, #tpu.memory_space<vmem>>, vector<1x7x7x4xf32>
    %c0_17 = arith.constant 0 : index
    %c0_18 = arith.constant 0 : index
    %c1_19 = arith.constant 1 : index
    %c0_20 = arith.constant 0 : index
    %7 = tpu.strided_load %arg4[%c0_17, %c0_18, %c1_19, %c0_20] {strides = array<i32: 1, 1, 2, 1>} : memref<1x7x16x4xf32, #tpu.memory_space<vmem>>, vector<1x7x7x4xf32>
    %8 = arith.maximumf %6, %7 : vector<1x7x7x4xf32>
    %c0_21 = arith.constant 0 : index
    %c0_22 = arith.constant 0 : index
    %c2_23 = arith.constant 2 : index
    %c0_24 = arith.constant 0 : index
    %9 = tpu.strided_load %arg4[%c0_21, %c0_22, %c2_23, %c0_24] {strides = array<i32: 1, 1, 2, 1>} : memref<1x7x16x4xf32, #tpu.memory_space<vmem>>, vector<1x7x7x4xf32>
    %10 = arith.maximumf %8, %9 : vector<1x7x7x4xf32>
    %c0_25 = arith.constant 0 : index
    %c0_26 = arith.constant 0 : index
    %c0_27 = arith.constant 0 : index
    %c0_28 = arith.constant 0 : index
    %11 = vector.load %arg3[%c0_25, %c0_26, %c0_27, %c0_28] : memref<1x7x7x4xf32, #tpu.memory_space<vmem>>, vector<1x7x7x4xf32>
    tpu.vector_store %arg3[%c0_25, %c0_26, %c0_27, %c0_28], %10 {strides = array<i32>} : memref<1x7x7x4xf32, #tpu.memory_space<vmem>>, vector<1x7x7x4xf32>,
    return
  }
  func.func @transform_0(%arg0: i32, %arg1: i32) -> (i32, i32, i32, i32) {
    %c0_i32 = arith.constant 0 : i32
    %c0_i32_0 = arith.constant 0 : i32
    %c0_i32_1 = arith.constant 0 : i32
    return %arg0, %c0_i32, %c0_i32_0, %arg1 : i32, i32, i32, i32
  }
  func.func @transform_1(%arg0: i32, %arg1: i32) -> (i32, i32, i32, i32) {
    %c0_i32 = arith.constant 0 : i32
    %c0_i32_0 = arith.constant 0 : i32
    %c0_i32_1 = arith.constant 0 : i32
    return %arg0, %c0_i32, %c0_i32_0, %arg1 : i32, i32, i32, i32
  }
}

</mosaic_0001>

<llo_original>
// kernel: tpu_custom_call.1
$region0: #{tpu_custom_call.1}
  #allocation0 [shape = 'u32[]', space=smem, size = 0x4, offset = 0x4, fixed_abs, tag = 'smem constant byte address 0x4 - core index']
  #allocation1 [shape = 'u32[144,128]{1,0:T(1,128)}', space=vmem, size = 0x12000, scoped, tag = 'internal scratch']
  #allocation2 [shape = 'f32[1,7,16,4]{3,2,1,0:T(8,128)}', space=vmem, size = 0xe000, scoped, tag = 'scratch operand']
  %s0 = inlined_call_operand.vmem [shape: f32[2,16,16,4], index: 0, kind: input, shape index: {}]
  %s1 = inlined_call_operand.vmem [shape: f32[2,7,7,4], index: 1, kind: output, shape index: {}]
  %s2 = sld [smem:[#allocation0]]
  $region37: #{tpu_custom_call.1} parent=0
    _
  %s4 = ssub.s32 1, %s2
  %s5 = scalar_select 0, %s4, %s2
  loop: start=0, step=1, limit=4
  $region2: #{tpu_custom_call.1} parent=0 // loop_pre_header
    _
  $region3: #{tpu_custom_call.1} parent=0 // loop_header
    %s7 = sphi 0, %s11
    %p8 = scmp.ge.s32.totalorder %s7, 4
    %s14 = sphi 0, %s26
    %s15 = sphi 0, %s22
    %s16 = sphi 0, %s14
    %s17 = sphi 0, %s15
    %s18 = sphi 0, %s16
    %s19 = sphi 0, %s17
    %s31 = sphi 0, %s33
    %s34 = sphi 0, %s31
    %s35 = sphi 0, %s34
    %s51 = sphi 0, %s35
    %s59 = sphi 0, %s61
    %s62 = sphi 0, %s59
    %s63 = sphi 0, %s62
    %s79 = sphi 0, %s63
  $region4: #{tpu_custom_call.1} parent=0 // loop_header_branch
    %10 = sbr.rel (%p8) target = $region8
  $region5: #{tpu_custom_call.1} parent=0 // loop_body
    %s12 = ssub.s32 %s7, 1
    %s13 = ssub.s32 %s7, 2
    %s20 = sadd.s32 1, %s15
    %p21 = scmp.ge.s32.totalorder %s20, 1
    %s22 = scalar_select %p21, 0, %s20
    %s23 = sadd.s32 1, %s14
    %s24 = scalar_select %p21, %s23, %s14
    %p25 = scmp.ge.s32.totalorder %s24, 2
    %s26 = scalar_select %p25, 0, %s24
    %s27 = ssub.s32 %s14, %s26
    %s28 = ssub.s32 %s15, %s22
    %s29 = sor.u32 %s27, %s28
    %p30 = scmp.eq.s32.totalorder %s29, 0
    %s32 = sadd.s32 %s31, 1
    %s33 = scalar_select %p30, %s31, %s32
    %p36 = pneg %p30
    %p37 = scmp.eq.s32.totalorder %s7, 1
    %p38 = por %p36, %p37
    %p39 = scmp.ne.s32.totalorder %s31, %s34
    %p40 = scmp.eq.s32.totalorder %s7, 0
    %p41 = por %p39, %p40
    %p42 = scmp.ne.s32.totalorder %s31, %s34
    %p43 = scmp.eq.s32.totalorder %s12, 1
    %p44 = por %p42, %p43
    %p45 = scmp.ne.s32.totalorder %s34, %s35
    %p46 = scmp.eq.s32.totalorder %s12, 0
    %p47 = por %p45, %p46
    %p48 = scmp.ne.s32.totalorder %s34, %s35
    %p49 = scmp.eq.s32.totalorder %s13, 1
    %p50 = por %p48, %p49
    %p52 = scmp.ne.s32.totalorder %s35, %s51
    %p53 = scmp.eq.s32.totalorder %s13, 0
    %p54 = por %p52, %p53
    %s55 = ssub.s32 %s14, %s26
    %s56 = ssub.s32 %s15, %s22
    %s57 = sor.u32 %s55, %s56
    %p58 = scmp.eq.s32.totalorder %s57, 0
    %s60 = sadd.s32 %s59, 1
    %s61 = scalar_select %p58, %s59, %s60
    %p64 = pneg %p58
    %p65 = scmp.eq.s32.totalorder %s7, 1
    %p66 = por %p64, %p65
    %p67 = scmp.ne.s32.totalorder %s59, %s62
    %p68 = scmp.eq.s32.totalorder %s7, 0
    %p69 = por %p67, %p68
    %p70 = scmp.ne.s32.totalorder %s59, %s62
    %p71 = scmp.eq.s32.totalorder %s12, 1
    %p72 = por %p70, %p71
    %p73 = scmp.ne.s32.totalorder %s62, %s63
    %p74 = scmp.eq.s32.totalorder %s12, 0
    %p75 = por %p73, %p74
    %p76 = scmp.ne.s32.totalorder %s62, %s63
    %p77 = scmp.eq.s32.totalorder %s13, 1
    %p78 = por %p76, %p77
    %p80 = scmp.ne.s32.totalorder %s63, %s79
    %p81 = scmp.eq.s32.totalorder %s13, 0
    %p82 = por %p80, %p81
    %p83 = scmp.le.s32.totalorder 1, %s7
    %p84 = scmp.lt.s32.totalorder %s7, 3
    %p85 = pnand %p83, %p84
    %p86 = pneg %p85
    // Predicated region
    $region9: #{tpu_custom_call.1} parent=5 // pred_check
      _
    $region10: #{tpu_custom_call.1} parent=5 // pred_check_branch
      %88 = sbr.rel (%p85) target = $region12
    $region11: #{tpu_custom_call.1} parent=5 // pred_region
      %s89 = ssub.s32 %s7, 1
    $region12: #{tpu_custom_call.1} parent=5 // pred_fallthru
      _
    %p90 = scmp.lt.s32.totalorder %s7, 2
    // Predicated region
    $region13: #{tpu_custom_call.1} parent=5 // pred_check
      %p91 = pneg %p90
    $region14: #{tpu_custom_call.1} parent=5 // pred_check_branch
      %93 = sbr.rel (%p91) target = $region16
    $region15: #{tpu_custom_call.1} parent=5 // pred_region
      // Predicated region
      $region17: #{tpu_custom_call.1} parent=15 // pred_check
        %p94 = pneg %p41
      $region18: #{tpu_custom_call.1} parent=15 // pred_check_branch
        %96 = sbr.rel (%p94) target = $region20
      $region19: #{tpu_custom_call.1} parent=15 // pred_region
        %p97 = scmp.lt.s32.totalorder %s14, 1
        %s98 = scalar_select %p97, %s14, 1
        %p99 = scmp.lt.s32.totalorder %s15, 0
        %s100 = scalar_select %p99, %s15, 0
        %s101 = smul.addr %s98, 32
        %s102 = sadd.s32 %s100, %s101
        %s103 = smul.addr %s102, 8
        %s104 = scalar_lea.vmem %s0, %s103
      $region20: #{tpu_custom_call.1} parent=15 // pred_fallthru
        _
    $region16: #{tpu_custom_call.1} parent=5 // pred_fallthru
      _
    %p105 = scmp.le.s32.totalorder 1, %s7
    %p106 = scmp.lt.s32.totalorder %s7, 3
    %p107 = pnand %p105, %p106
    %p108 = pneg %p107
    // Predicated region
    $region21: #{tpu_custom_call.1} parent=5 // pred_check
      _
    $region22: #{tpu_custom_call.1} parent=5 // pred_check_branch
      %110 = sbr.rel (%p107) target = $region24
    $region23: #{tpu_custom_call.1} parent=5 // pred_region
      %s111 = ssub.s32 %s7, 1
      %p112 = scmp.lt.s32.totalorder %s16, 1
      %s113 = scalar_select %p112, %s16, 1
      %p114 = scmp.lt.s32.totalorder %s17, 0
      %s115 = scalar_select %p114, %s17, 0
      %s116 = smul.addr %s113, 32
      %s117 = sadd.s32 %s115, %s116
      %s118 = smul.addr %s117, 8
      %s119 = scalar_lea.vmem %s0, %s118
      %p120 = pneg %p47
      %p121 = pneg %p44
      %p122 = pneg %p75
      %p123 = pneg %p72
      %p124 = scmp.lt.s32.totalorder %s16, 1
      %s125 = scalar_select %p124, %s16, 1
      %p126 = scmp.lt.s32.totalorder %s17, 0
      %s127 = scalar_select %p126, %s17, 0
      %s128 = smul.addr %s125, 7
      %s129 = sadd.s32 %s127, %s128
      %s130 = smul.addr %s129, 8
      %s131 = scalar_lea.vmem %s1, %s130
      %p132 = scmp.lt.s32.totalorder %s16, 1
      %s133 = scalar_select %p132, %s16, 1
      %p134 = scmp.lt.s32.totalorder %s17, 0
      %s135 = scalar_select %p134, %s17, 0
      %s136 = smul.addr %s133, 32
      %s137 = sadd.s32 %s135, %s136
      %s138 = smul.addr %s137, 8
      %s139 = scalar_lea.vmem %s0, %s138
      %p140 = scmp.lt.s32.totalorder %s16, 1
      %s141 = scalar_select %p140, %s16, 1
      %p142 = scmp.lt.s32.totalorder %s17, 0
      %s143 = scalar_select %p142, %s17, 0
      %s144 = smul.addr %s141, 7
      %s145 = sadd.s32 %s143, %s144
      %s146 = smul.addr %s145, 8
      %s147 = scalar_lea.vmem %s1, %s146
      %v148 = vld [vmem:[%s139] sm:$0xff]
      %v149 = vld [vmem:[%s139 + $0x8] sm:$0xff]
      %v150 = vld [vmem:[%s139 + $0x20] sm:$0xff]
      %v151 = vld [vmem:[%s139 + $0x28] sm:$0xff]
      %v152 = vld [vmem:[%s139 + $0x40] sm:$0xff]
      %v153 = vld [vmem:[%s139 + $0x48] sm:$0xff]
      %v154 = vld [vmem:[%s139 + $0x60] sm:$0xff]
      %v155 = vld [vmem:[%s139 + $0x68] sm:$0xff]
      %v156 = vld [vmem:[%s139 + $0x80] sm:$0xff]
      %v157 = vld [vmem:[%s139 + $0x88] sm:$0xff]
      %v158 = vld [vmem:[%s139 + $0xa0] sm:$0xff]
      %v159 = vld [vmem:[%s139 + $0xa8] sm:$0xff]
      %v160 = vld [vmem:[%s139 + $0xc0] sm:$0xff]
      %v161 = vld [vmem:[%s139 + $0xc8] sm:$0xff]
      %s162 = scalar_lea.vmem %s139, 16
      %v163 = vld [vmem:[%s162] sm:$0xff]
      %v164 = vld [vmem:[%s162 + $0x8] sm:$0xff]
      %v165 = vld [vmem:[%s162 + $0x20] sm:$0xff]
      %v166 = vld [vmem:[%s162 + $0x28] sm:$0xff]
      %v167 = vld [vmem:[%s162 + $0x40] sm:$0xff]
      %v168 = vld [vmem:[%s162 + $0x48] sm:$0xff]
      %v169 = vld [vmem:[%s162 + $0x60] sm:$0xff]
      %v170 = vld [vmem:[%s162 + $0x68] sm:$0xff]
      %v171 = vld [vmem:[%s162 + $0x80] sm:$0xff]
      %v172 = vld [vmem:[%s162 + $0x88] sm:$0xff]
      %v173 = vld [vmem:[%s162 + $0xa0] sm:$0xff]
      %v174 = vld [vmem:[%s162 + $0xa8] sm:$0xff]
      %v175 = vld [vmem:[%s162 + $0xc0] sm:$0xff]
      %v176 = vld [vmem:[%s162 + $0xc8] sm:$0xff]
      %v177 = vmax.f32 %v148, %v163
      %v178 = vmax.f32 %v149, %v164
      %v179 = vmax.f32 %v150, %v165
      %v180 = vmax.f32 %v151, %v166
      %v181 = vmax.f32 %v152, %v167
      %v182 = vmax.f32 %v153, %v168
      %v183 = vmax.f32 %v154, %v169
      %v184 = vmax.f32 %v155, %v170
      %v185 = vmax.f32 %v156, %v171
      %v186 = vmax.f32 %v157, %v172
      %v187 = vmax.f32 %v158, %v173
      %v188 = vmax.f32 %v159, %v174
      %v189 = vmax.f32 %v160, %v175
      %v190 = vmax.f32 %v161, %v176
      %s191 = scalar_lea.vmem %s139, 32
      %v192 = vld [vmem:[%s191] sm:$0xff]
      %v193 = vld [vmem:[%s191 + $0x8] sm:$0xff]
      %v194 = vld [vmem:[%s191 + $0x20] sm:$0xff]
      %v195 = vld [vmem:[%s191 + $0x28] sm:$0xff]
      %v196 = vld [vmem:[%s191 + $0x40] sm:$0xff]
      %v197 = vld [vmem:[%s191 + $0x48] sm:$0xff]
      %v198 = vld [vmem:[%s191 + $0x60] sm:$0xff]
      %v199 = vld [vmem:[%s191 + $0x68] sm:$0xff]
      %v200 = vld [vmem:[%s191 + $0x80] sm:$0xff]
      %v201 = vld [vmem:[%s191 + $0x88] sm:$0xff]
      %v202 = vld [vmem:[%s191 + $0xa0] sm:$0xff]
      %v203 = vld [vmem:[%s191 + $0xa8] sm:$0xff]
      %v204 = vld [vmem:[%s191 + $0xc0] sm:$0xff]
      %v205 = vld [vmem:[%s191 + $0xc8] sm:$0xff]
      %v206 = vmax.f32 %v177, %v192
      %v207 = vmax.f32 %v178, %v193
      %v208 = vmax.f32 %v179, %v194
      %v209 = vmax.f32 %v180, %v195
      %v210 = vmax.f32 %v181, %v196
      %v211 = vmax.f32 %v182, %v197
      %v212 = vmax.f32 %v183, %v198
      %v213 = vmax.f32 %v184, %v199
      %v214 = vmax.f32 %v185, %v200
      %v215 = vmax.f32 %v186, %v201
      %v216 = vmax.f32 %v187, %v202
      %v217 = vmax.f32 %v188, %v203
      %v218 = vmax.f32 %v189, %v204
      %v219 = vmax.f32 %v190, %v205
      %vm220 = vcmask 31744
      %221 = vst.msk [vmem:[#allocation2] sm:$0xff] %vm220, %v206
      %222 = vst.msk [vmem:[#allocation2 + $0x8] sm:$0xff] %vm220, %v207
      %223 = vst.msk [vmem:[#allocation2 + $0x10] sm:$0xff] %vm220, %v208
      %224 = vst.msk [vmem:[#allocation2 + $0x18] sm:$0xff] %vm220, %v209
      %225 = vst.msk [vmem:[#allocation2 + $0x20] sm:$0xff] %vm220, %v210
      %226 = vst.msk [vmem:[#allocation2 + $0x28] sm:$0xff] %vm220, %v211
      %227 = vst.msk [vmem:[#allocation2 + $0x30] sm:$0xff] %vm220, %v212
      %228 = vst.msk [vmem:[#allocation2 + $0x38] sm:$0xff] %vm220, %v213
      %229 = vst.msk [vmem:[#allocation2 + $0x40] sm:$0xff] %vm220, %v214
      %230 = vst.msk [vmem:[#allocation2 + $0x48] sm:$0xff] %vm220, %v215
      %231 = vst.msk [vmem:[#allocation2 + $0x50] sm:$0xff] %vm220, %v216
      %232 = vst.msk [vmem:[#allocation2 + $0x58] sm:$0xff] %vm220, %v217
      %233 = vst.msk [vmem:[#allocation2 + $0x60] sm:$0xff] %vm220, %v218
      %234 = vst.msk [vmem:[#allocation2 + $0x68] sm:$0xff] %vm220, %v219
      %v235 = vld [vmem:[#allocation2] ss:$2 sm:$0x7f]
      %s236 = scalar_lea.vmem [#allocation2], 16
      %v237 = vld [vmem:[%s236] ss:$2 sm:$0x7f]
      %s238 = scalar_lea.vmem [#allocation2], 32
      %v239 = vld [vmem:[%s238] ss:$2 sm:$0x7f]
      %s240 = scalar_lea.vmem [#allocation2], 48
      %v241 = vld [vmem:[%s240] ss:$2 sm:$0x7f]
      %s242 = scalar_lea.vmem [#allocation2], 64
      %v243 = vld [vmem:[%s242] ss:$2 sm:$0x7f]
      %s244 = scalar_lea.vmem [#allocation2], 80
      %v245 = vld [vmem:[%s244] ss:$2 sm:$0x7f]
      %s246 = scalar_lea.vmem [#allocation2], 96
      %v247 = vld [vmem:[%s246] ss:$2 sm:$0x7f]
      %s248 = scalar_lea.vmem [#allocation2], 1
      %v249 = vld [vmem:[%s248] ss:$2 sm:$0x7f]
      %s250 = scalar_lea.vmem [#allocation2], 17
      %v251 = vld [vmem:[%s250] ss:$2 sm:$0x7f]
      %s252 = scalar_lea.vmem [#allocation2], 33
      %v253 = vld [vmem:[%s252] ss:$2 sm:$0x7f]
      %s254 = scalar_lea.vmem [#allocation2], 49
      %v255 = vld [vmem:[%s254] ss:$2 sm:$0x7f]
      %s256 = scalar_lea.vmem [#allocation2], 65
      %v257 = vld [vmem:[%s256] ss:$2 sm:$0x7f]
      %s258 = scalar_lea.vmem [#allocation2], 81
      %v259 = vld [vmem:[%s258] ss:$2 sm:$0x7f]
      %s260 = scalar_lea.vmem [#allocation2], 97
      %v261 = vld [vmem:[%s260] ss:$2 sm:$0x7f]
      %v262 = vmax.f32 %v235, %v249
      %v263 = vmax.f32 %v237, %v251
      %v264 = vmax.f32 %v239, %v253
      %v265 = vmax.f32 %v241, %v255
      %v266 = vmax.f32 %v243, %v257
      %v267 = vmax.f32 %v245, %v259
      %v268 = vmax.f32 %v247, %v261
      %s269 = scalar_lea.vmem [#allocation2], 2
      %v270 = vld [vmem:[%s269] ss:$2 sm:$0x7f]
      %s271 = scalar_lea.vmem [#allocation2], 18
      %v272 = vld [vmem:[%s271] ss:$2 sm:$0x7f]
      %s273 = scalar_lea.vmem [#allocation2], 34
      %v274 = vld [vmem:[%s273] ss:$2 sm:$0x7f]
      %s275 = scalar_lea.vmem [#allocation2], 50
      %v276 = vld [vmem:[%s275] ss:$2 sm:$0x7f]
      %s277 = scalar_lea.vmem [#allocation2], 66
      %v278 = vld [vmem:[%s277] ss:$2 sm:$0x7f]
      %s279 = scalar_lea.vmem [#allocation2], 82
      %v280 = vld [vmem:[%s279] ss:$2 sm:$0x7f]
      %s281 = scalar_lea.vmem [#allocation2], 98
      %v282 = vld [vmem:[%s281] ss:$2 sm:$0x7f]
      %v283 = vmax.f32 %v262, %v270
      %v284 = vmax.f32 %v263, %v272
      %v285 = vmax.f32 %v264, %v274
      %v286 = vmax.f32 %v265, %v276
      %v287 = vmax.f32 %v266, %v278
      %v288 = vmax.f32 %v267, %v280
      %v289 = vmax.f32 %v268, %v282
      %vm290 = vcmask 30720
      %291 = vst.msk [vmem:[%s147] sm:$0x7f] %vm290, %v283
      %292 = vst.msk [vmem:[%s147 + $0x8] sm:$0x7f] %vm290, %v284
      %293 = vst.msk [vmem:[%s147 + $0x10] sm:$0x7f] %vm290, %v285
      %294 = vst.msk [vmem:[%s147 + $0x18] sm:$0x7f] %vm290, %v286
      %295 = vst.msk [vmem:[%s147 + $0x20] sm:$0x7f] %vm290, %v287
      %296 = vst.msk [vmem:[%s147 + $0x28] sm:$0x7f] %vm290, %v288
      %297 = vst.msk [vmem:[%s147 + $0x30] sm:$0x7f] %vm290, %v289
      %p298 = scmp.lt.s32.totalorder %s16, 1
      %s299 = scalar_select %p298, %s16, 1
      %p300 = scmp.lt.s32.totalorder %s17, 0
      %s301 = scalar_select %p300, %s17, 0
      %s302 = smul.addr %s299, 7
      %s303 = sadd.s32 %s301, %s302
      %s304 = smul.addr %s303, 8
      %s305 = scalar_lea.vmem %s1, %s304
      // Predicated region
      $region25: #{tpu_custom_call.1} parent=23 // pred_check
        %p306 = pneg %p72
      $region26: #{tpu_custom_call.1} parent=23 // pred_check_branch
        %308 = sbr.rel (%p306) target = $region28
      $region27: #{tpu_custom_call.1} parent=23 // pred_region
        _
      $region28: #{tpu_custom_call.1} parent=23 // pred_fallthru
        _
    $region24: #{tpu_custom_call.1} parent=5 // pred_fallthru
      _
    %p309 = scmp.le.s32.totalorder 2, %s7
    // Predicated region
    $region29: #{tpu_custom_call.1} parent=5 // pred_check
      %p310 = pneg %p309
    $region30: #{tpu_custom_call.1} parent=5 // pred_check_branch
      %312 = sbr.rel (%p310) target = $region32
    $region31: #{tpu_custom_call.1} parent=5 // pred_region
      %s313 = ssub.s32 %s7, 2
      // Predicated region
      $region33: #{tpu_custom_call.1} parent=31 // pred_check
        %p314 = pneg %p78
      $region34: #{tpu_custom_call.1} parent=31 // pred_check_branch
        %316 = sbr.rel (%p314) target = $region36
      $region35: #{tpu_custom_call.1} parent=31 // pred_region
        %p317 = scmp.lt.s32.totalorder %s18, 1
        %s318 = scalar_select %p317, %s18, 1
        %p319 = scmp.lt.s32.totalorder %s19, 0
        %s320 = scalar_select %p319, %s19, 0
        %s321 = smul.addr %s318, 7
        %s322 = sadd.s32 %s320, %s321
        %s323 = smul.addr %s322, 8
        %s324 = scalar_lea.vmem %s1, %s323
      $region36: #{tpu_custom_call.1} parent=31 // pred_fallthru
        _
    $region32: #{tpu_custom_call.1} parent=5 // pred_fallthru
      _
  $region6: #{tpu_custom_call.1} parent=0 // loop_footer
    %s11 = sadd.s32 1, %s7
  $region7: #{tpu_custom_call.1} parent=0 // loop_footer_branch
    %6 = sbr.rel target = $region3
  $region8: #{tpu_custom_call.1} parent=0 // loop_exit
    _

</llo_original>
